<compile_context>
chip_gen: v6e
topology: v6e:2x2x1
jax: 0.10.0
libtpu: 0.0.40
codegen_flags: <defaults>
</compile_context>

<pallas_src>
import functools

import jax
import jax.numpy as jnp
from jax.experimental import pallas as pl
from jax.experimental.pallas import tpu as pltpu


def _neg_kernel(x_ref, o_ref):
    # The entire "compute": y = -x on the VMEM tile (free VPU op for a
    # memory-bound kernel).
    o_ref[...] = -x_ref[...]


def _round_up(n: int, m: int) -> int:
    return ((n + m - 1) // m) * m


def _neg_identity_impl(x: jnp.ndarray, *, alias_input: bool) -> jnp.ndarray:
    orig_shape = x.shape
    total = int(x.size)
    if total == 0:
        return x

    flat = x.reshape(-1)

    # Split off only the ragged (<128-element) tail; never pad/slice the whole
    # array (that would add ~2 extra full-array HBM copies).
    tail = total % 128
    bulk = total - tail
    if bulk == 0:
        # Sub-vreg input: a kernel launch cannot beat the fused jnp negate.
        return (-flat).reshape(orig_shape)

    bulk_flat = flat if tail == 0 else flat[:bulk]

    # Lane width: largest of {1024, 512, 256, 128} dividing the bulk.
    lane = 128
    for cand in (1024, 512, 256):
        if bulk % cand == 0:
            lane = cand
            break

    rows = bulk // lane
    x2 = bulk_flat.reshape(rows, lane)

    itemsize = x2.dtype.itemsize
    bytes_per_row = lane * itemsize
    # Sublane multiple for the dtype (8 for f32, 16 for bf16, 32 for int8).
    sublane = max(8, 32 // max(1, itemsize))

    # ~8 MiB per buffer; with (2 in + 2 out) double buffers that is ~32 MiB,
    # under the explicit 48 MiB VMEM limit on every generation.
    target_tile_bytes = 8 * 1024 * 1024
    tile_r = max(sublane, min(rows, target_tile_bytes // bytes_per_row))
    tile_r -= tile_r % sublane
    if tile_r <= 0 or tile_r >= rows:
        tile_r = rows

    # Guarantee at least 2 grid steps when the row count allows, so the
    # "parallel" axis actually shards across both v7x TensorCores.
    if tile_r >= rows and rows > sublane:
        tile_r = min(rows, _round_up(pl.cdiv(rows, 2), sublane))

    n_steps = pl.cdiv(rows, tile_r)
    # Prefer an even step count (balanced across 2 TCs) when it is cheap.
    if n_steps > 1 and n_steps % 2 == 1:
        cand_r = _round_up(pl.cdiv(rows, n_steps + 1), sublane)
        if 0 < cand_r < rows and pl.cdiv(rows, cand_r) % 2 == 0:
            tile_r = cand_r
            n_steps = pl.cdiv(rows, tile_r)

    out2 = pl.pallas_call(
        _neg_kernel,
        out_shape=jax.ShapeDtypeStruct((rows, lane), x2.dtype),
        grid=(n_steps,),
        in_specs=[pl.BlockSpec((tile_r, lane), lambda i: (i, 0))],
        out_specs=pl.BlockSpec((tile_r, lane), lambda i: (i, 0)),
        input_output_aliases=({0: 0} if alias_input else {}),
        compiler_params=pltpu.CompilerParams(
            dimension_semantics=("parallel",),
            vmem_limit_bytes=48 * 1024 * 1024,
        ),
        cost_estimate=pl.CostEstimate(
            flops=bulk,
            transcendentals=0,
            bytes_accessed=2 * bulk * itemsize,
        ),
    )(x2)

    out_bulk = out2.reshape(-1)
    if tail == 0:
        return out_bulk.reshape(orig_shape)
    # Tiny (<128-element) ragged tail: plain jnp negate, stitched back under jit.
    out_tail = -flat[bulk:]
    return jnp.concatenate([out_bulk, out_tail]).reshape(orig_shape)


# Standard entry point: jitted so wrapper reshapes are metadata-only and the
# pallas_call is the only real HBM traffic.  No input aliasing here because a
# non-donated input would force XLA to insert a defensive copy.
neg_identity = jax.jit(functools.partial(_neg_identity_impl, alias_input=False))

# Variant for callers that can donate x: the kernel output aliases the input
# buffer, avoiding a second full-size HBM allocation.
neg_identity_donated = jax.jit(
    functools.partial(_neg_identity_impl, alias_input=True), donate_argnums=0
)


if __name__ == "__main__":
    key = jax.random.PRNGKey(0)
    # Small NCHW input consistent with typical conv-style usage.
    x = jax.random.normal(key, (2, 4, 16, 16), dtype=jnp.float32)

    y = jax.block_until_ready(neg_identity(x))
    assert y.shape == x.shape, (y.shape, x.shape)
    assert y.dtype == x.dtype, (y.dtype, x.dtype)
    assert bool(jnp.array_equal(y, -x)), "NegIdentity output mismatch"

    # Exercise the donating / input-aliasing variant on a throwaway copy.
    x_copy = x + 0.0
    y2 = jax.block_until_ready(neg_identity_donated(x_copy))
    assert bool(jnp.array_equal(y2, -x)), "NegIdentity (donated) output mismatch"

    print("KERNEL_OK")
</pallas_src>

<mosaic_0001>
module attributes {stable_mosaic.version = 11 : i64} {
  func.func @_neg_kernel(%arg0: i32, %arg1: memref<2x1024xf32, #tpu.memory_space<vmem>>, %arg2: memref<2x1024xf32, #tpu.memory_space<vmem>>) attributes {dimension_semantics = [#tpu.dimension_semantics<parallel>], iteration_bounds = array<i64: 1>, scalar_prefetch = 0 : i64, scratch_operands = 0 : i64, tpu.core_type = #tpu.core_type<tc>, window_params = [{transform_indices = @transform_0, window_bounds = array<i64: 2, 1024>}, {transform_indices = @transform_1, window_bounds = array<i64: 2, 1024>}]} {
    %c0 = arith.constant 0 : index
    %c0_0 = arith.constant 0 : index
    %0 = vector.load %arg1[%c0, %c0_0] : memref<2x1024xf32, #tpu.memory_space<vmem>>, vector<2x1024xf32>
    %cst = arith.constant 0.000000e+00 : f32
    %1 = vector.broadcast %cst : f32 to vector<2x1024xf32>
    %2 = arith.subf %1, %0 : vector<2x1024xf32>
    %c0_1 = arith.constant 0 : index
    %c0_2 = arith.constant 0 : index
    %3 = vector.load %arg2[%c0_1, %c0_2] : memref<2x1024xf32, #tpu.memory_space<vmem>>, vector<2x1024xf32>
    tpu.vector_store %arg2[%c0_1, %c0_2], %2 {strides = array<i32>} : memref<2x1024xf32, #tpu.memory_space<vmem>>, vector<2x1024xf32>,
    return
  }
  func.func @transform_0(%arg0: i32) -> (i32, i32) {
    %c0_i32 = arith.constant 0 : i32
    %c0_i32_0 = arith.constant 0 : i32
    return %arg0, %c0_i32 : i32, i32
  }
  func.func @transform_1(%arg0: i32) -> (i32, i32) {
    %c0_i32 = arith.constant 0 : i32
    %c0_i32_0 = arith.constant 0 : i32
    return %arg0, %c0_i32 : i32, i32
  }
}

</mosaic_0001>

<llo_original>
// kernel: _neg_identity_impl.1
$region0: #{_neg_identity_impl.1}
  #allocation0 [shape = 'u32[]', space=smem, size = 0x4, offset = 0x4, fixed_abs, tag = 'smem constant byte address 0x4 - core index']
  #allocation1 [shape = 'u32[144,128]{1,0:T(1,128)}', space=vmem, size = 0x12000, scoped, tag = 'internal scratch']
  %s0 = inlined_call_operand.vmem [shape: f32[2,1024], index: 0, kind: input, shape index: {}]
  %s1 = inlined_call_operand.vmem [shape: f32[2,1024], index: 1, kind: output, shape index: {}]
  %s2 = sld [smem:[#allocation0]]
  $region14: #{_neg_identity_impl.1} parent=0
    _
  %s4 = ssub.s32 1, %s2
  %s5 = scalar_select 0, %s4, %s2
  // Predicated region
  $region2: #{_neg_identity_impl.1} parent=0 // pred_check
    _
  $region3: #{_neg_identity_impl.1} parent=0 // pred_check_branch
    %7 = sbr.rel (0) target = $region5
  $region4: #{_neg_identity_impl.1} parent=0 // pred_region
    _
  $region5: #{_neg_identity_impl.1} parent=0 // pred_fallthru
    _
  %v8 = vld [vmem:[%s0] sm:$0xff]
  %v9 = vld [vmem:[%s0 + $0x8] sm:$0xff]
  %v10 = vsub.f32 0.0, %v8
  %v11 = vsub.f32 0.0, %v9
  %12 = vst [vmem:[%s1] sm:$0xff] %v10
  %13 = vst [vmem:[%s1 + $0x8] sm:$0xff] %v11
  // Predicated region
  $region6: #{_neg_identity_impl.1} parent=0 // pred_check
    _
  $region7: #{_neg_identity_impl.1} parent=0 // pred_check_branch
    %15 = sbr.rel (0) target = $region9
  $region8: #{_neg_identity_impl.1} parent=0 // pred_region
    _
  $region9: #{_neg_identity_impl.1} parent=0 // pred_fallthru
    _
  // Predicated region
  $region10: #{_neg_identity_impl.1} parent=0 // pred_check
    _
  $region11: #{_neg_identity_impl.1} parent=0 // pred_check_branch
    %17 = sbr.rel (0) target = $region13
  $region12: #{_neg_identity_impl.1} parent=0 // pred_region
    _
  $region13: #{_neg_identity_impl.1} parent=0 // pred_fallthru
    _

</llo_original>
